<compile_context>
chip_gen: v7x
topology: tpu7x:2x2x1
jax: 0.10.0
libtpu: 0.0.40
codegen_flags: <defaults>
</compile_context>

<pallas_src>
import jax
import jax.numpy as jnp
from jax import lax
from jax.experimental import pallas as pl
from jax.experimental.pallas import tpu as pltpu

DT = 0.05          # module default dt
N_SUB = 2          # Euler-Maruyama sub-steps per output interval
DIFF_SCALE = 0.1   # diffusion magnitude of the synthetic ode_func


def _sde_euler_kernel(h_ref, y0_ref, w_ref, b_ref, noise_ref, out_ref):
    """Single-invocation Euler-Maruyama time stepper.

    h_ref     : (T,)  f32 in SMEM  -- per-interval sub-step size (h[0] unused)
    y0_ref    : (B, D)             -- initial SDE state
    w_ref     : (D, 2D)            -- fused [Wf | Wg]
    b_ref     : (1, 2D)            -- fused [bf | bg]
    noise_ref : (T, N_SUB, B, D)   -- N(0,1) increments pre-scaled by DIFF_SCALE*sqrt(h[t])
    out_ref   : (T, B, D)          -- full output slab, resident in VMEM, flushed once
    """
    T = out_ref.shape[0]
    B, D = y0_ref.shape

    # Keep the (small) fused weights / bias resident across all time steps.
    w = w_ref[...]
    b = jnp.broadcast_to(b_ref[...], (B, 2 * D))   # hoisted: not re-emitted per sub-step

    y0 = y0_ref[...].astype(jnp.float32)
    out_ref[0] = y0.astype(out_ref.dtype)          # sdeint returns y0 at the first time point

    def time_step(t, y):
        h = h_ref[t]                               # sub-step size for interval (t[t-1], t[t])

        def substep(k, y):
            # One fused MXU matmul covers both the drift and diffusion nets.
            pre = jnp.dot(y, w, preferred_element_type=jnp.float32) + b
            drift = jnp.tanh(pre[:, :D])
            diff = jax.nn.sigmoid(pre[:, D:])
            z = noise_ref[t, k]                    # already scaled by DIFF_SCALE * sqrt(h)
            return y + drift * h + diff * z

        y = lax.fori_loop(0, N_SUB, substep, y, unroll=True)
        out_ref[t] = y.astype(out_ref.dtype)
        return y

    lax.fori_loop(1, T, time_step, y0)


def sadj_diffeq_solver(first_point, time_steps_to_predict, params, noise):
    """Pallas equivalent of SAdjDiffeqSolver.forward (forward pass only).

    first_point : (B, D) = (n_traj_samples, n_traj)
    time_steps_to_predict : (T,)
    params : (Wf (D,D), bf (1,D), Wg (D,D), bg (1,D))
    noise  : (T, N_SUB, B, D) standard-normal Brownian increments (row 0 unused)
    returns: (B, D, T)  == pred_y.permute(1, 2, 0)
    """
    B, D = first_point.shape
    T = time_steps_to_predict.shape[0]
    wf, bf, wg, bg = params

    # Fuse drift/diffusion nets into one matmul: W = [Wf | Wg], b = [bf | bg].
    w = jnp.concatenate([wf, wg], axis=1)          # (D, 2D)
    b = jnp.concatenate([bf, bg], axis=1)          # (1, 2D)
    # NOTE: for production D >= 128, cast `w` / `y` to bf16 for the MXU
    # (keep elementwise / transcendental math in f32, esp. on v5e).

    # Per-interval sub-step size (h[0] unused; first output is y0 itself).
    dts = (time_steps_to_predict[1:] - time_steps_to_predict[:-1]).astype(jnp.float32)
    dts = jnp.maximum(dts, 0.0)                    # guard non-monotone times (sqrt NaN)
    h = jnp.concatenate([jnp.zeros((1,), jnp.float32), dts / N_SUB])

    # Fold sqrt(h) and the diffusion scale into the pre-drawn increments so the
    # kernel's sequential chain has no per-step scalar sqrt / splat.
    noise_scaled = (DIFF_SCALE * jnp.sqrt(h))[:, None, None, None] * noise

    out_tbd = pl.pallas_call(
        _sde_euler_kernel,
        out_shape=jax.ShapeDtypeStruct((T, B, D), jnp.float32),
        in_specs=[
            pl.BlockSpec(memory_space=pltpu.MemorySpace.SMEM),   # h          (T,)
            pl.BlockSpec(memory_space=pltpu.MemorySpace.VMEM),   # y0         (B, D)
            pl.BlockSpec(memory_space=pltpu.MemorySpace.VMEM),   # W fused    (D, 2D)
            pl.BlockSpec(memory_space=pltpu.MemorySpace.VMEM),   # b fused    (1, 2D)
            pl.BlockSpec(memory_space=pltpu.MemorySpace.VMEM),   # noise      (T, N_SUB, B, D)
        ],
        out_specs=pl.BlockSpec(memory_space=pltpu.MemorySpace.VMEM),
    )(h, first_point, w, b, noise_scaled)

    # pred_y.permute(1, 2, 0): (T, B, D) -> (B, D, T). Done in XLA on purpose:
    # keeping the kernel output (T, B, D) keeps its writeback lane-dense.
    pred_y = jnp.transpose(out_tbd, (1, 2, 0))
    assert pred_y.shape[0] == B and pred_y.shape[1] == D
    return pred_y


if __name__ == "__main__":
    key = jax.random.PRNGKey(0)
    k1, k2, k3, k4 = jax.random.split(key, 4)

    # Small shapes: n_traj_samples=8, n_traj(latent state dim)=32, 8 time points.
    B, D, T = 8, 32, 8
    first_point = jax.random.normal(k1, (B, D), dtype=jnp.float32)
    time_steps = jnp.linspace(0.0, 0.7, T).astype(jnp.float32)   # spacing 0.1 = 2 * DT

    # Deterministic synthetic ode_func parameters.
    wf = 0.1 * jax.random.normal(k2, (D, D), dtype=jnp.float32)
    bf = jnp.zeros((1, D), dtype=jnp.float32)
    wg = 0.1 * jax.random.normal(k3, (D, D), dtype=jnp.float32)
    bg = jnp.zeros((1, D), dtype=jnp.float32)

    # Pre-drawn Brownian increments (standard normal; scaled in the wrapper).
    noise = jax.random.normal(k4, (T, N_SUB, B, D), dtype=jnp.float32)

    pred_y = sadj_diffeq_solver(first_point, time_steps, (wf, bf, wg, bg), noise)
    pred_y = jax.block_until_ready(pred_y)

    assert pred_y.shape == (B, D, T)
    assert bool(jnp.all(jnp.isfinite(pred_y)))
    # First requested time point must equal the initial state (sdeint semantics).
    assert bool(jnp.allclose(pred_y[:, :, 0], first_point, atol=1e-6))

    print("KERNEL_OK")
</pallas_src>

<mosaic_0001>
module attributes {stable_mosaic.version = 11 : i64} {
  func.func @_sde_euler_kernel(%arg0: memref<8xf32, #tpu.memory_space<smem>>, %arg1: memref<8x32xf32, #tpu.memory_space<vmem>>, %arg2: memref<32x64xf32, #tpu.memory_space<vmem>>, %arg3: memref<1x64xf32, #tpu.memory_space<vmem>>, %arg4: memref<8x2x8x32xf32, #tpu.memory_space<vmem>>, %arg5: memref<8x8x32xf32, #tpu.memory_space<vmem>>) attributes {dimension_semantics = [], scalar_prefetch = 0 : i64, scratch_operands = 0 : i64, tpu.core_type = #tpu.core_type<tc>} {
    %c0 = arith.constant 0 : index
    %c0_0 = arith.constant 0 : index
    %0 = vector.load %arg2[%c0, %c0_0] : memref<32x64xf32, #tpu.memory_space<vmem>>, vector<32x64xf32>
    %c0_1 = arith.constant 0 : index
    %c0_2 = arith.constant 0 : index
    %1 = vector.load %arg3[%c0_1, %c0_2] : memref<1x64xf32, #tpu.memory_space<vmem>>, vector<1x64xf32>
    %2 = vector.shape_cast %1 : vector<1x64xf32> to vector<1x64xf32>
    %3 = vector.broadcast %2 : vector<1x64xf32> to vector<8x64xf32>
    %c0_3 = arith.constant 0 : index
    %c0_4 = arith.constant 0 : index
    %4 = vector.load %arg1[%c0_3, %c0_4] : memref<8x32xf32, #tpu.memory_space<vmem>>, vector<8x32xf32>
    %c0_5 = arith.constant 0 : index
    %c0_6 = arith.constant 0 : index
    %c0_7 = arith.constant 0 : index
    %5 = vector.load %arg5[%c0_5, %c0_6, %c0_7] : memref<8x8x32xf32, #tpu.memory_space<vmem>>, vector<1x8x32xf32>
    %6 = vector.shape_cast %5 : vector<1x8x32xf32> to vector<8x32xf32>
    %7 = vector.shape_cast %4 : vector<8x32xf32> to vector<1x8x32xf32>
    tpu.vector_store %arg5[%c0_5, %c0_6, %c0_7], %7 {strides = array<i32>} : memref<8x8x32xf32, #tpu.memory_space<vmem>>, vector<1x8x32xf32>,
    %c1_i32 = arith.constant 1 : i32
    %c7_i32 = arith.constant 7 : i32
    %8 = arith.addi %c1_i32, %c7_i32 : i32
    %c1_i32_8 = arith.constant 1 : i32
    %9 = scf.for %arg6 = %c1_i32 to %8 step %c1_i32_8 iter_args(%arg7 = %4) -> (vector<8x32xf32>)  : i32 {
      %10 = arith.index_cast %arg6 : i32 to index
      %11 = memref.load %arg0[%10] : memref<8xf32, #tpu.memory_space<smem>>
      %c0_i32 = arith.constant 0 : i32
      %cst = arith.constant dense<0.000000e+00> : vector<8x64xf32>
      %12 = tpu.matmul %arg7, %0, %cst {dimension_numbers = #tpu.dot_dimension_numbers<[1], [0], [0], [1], [0, 0, 1, 1], [], []>} : vector<8x32xf32>, vector<32x64xf32>, vector<8x64xf32> -> vector<8x64xf32>
      %13 = arith.addf %12, %3 : vector<8x64xf32>
      %14 = vector.extract_strided_slice %13 {offsets = [0, 0], sizes = [8, 32], strides = [1, 1]} : vector<8x64xf32> to vector<8x32xf32>
      %15 = math.tanh %14 : vector<8x32xf32>
      %16 = vector.extract_strided_slice %13 {offsets = [0, 32], sizes = [8, 32], strides = [1, 1]} : vector<8x64xf32> to vector<8x32xf32>
      %17 = arith.negf %16 : vector<8x32xf32>
      %18 = math.exp %17 : vector<8x32xf32>
      %cst_10 = arith.constant 1.000000e+00 : f32
      %19 = vector.broadcast %cst_10 : f32 to vector<8x32xf32>
      %20 = arith.addf %19, %18 : vector<8x32xf32>
      %21 = arith.divf %19, %20 : vector<8x32xf32>
      %22 = arith.index_cast %arg6 : i32 to index
      %23 = arith.index_cast %c0_i32 : i32 to index
      %c0_11 = arith.constant 0 : index
      %c0_12 = arith.constant 0 : index
      %24 = vector.load %arg4[%22, %23, %c0_11, %c0_12] : memref<8x2x8x32xf32, #tpu.memory_space<vmem>>, vector<1x1x8x32xf32>
      %25 = vector.shape_cast %24 : vector<1x1x8x32xf32> to vector<8x32xf32>
      %26 = vector.broadcast %11 : f32 to vector<8x32xf32>
      %27 = arith.mulf %15, %26 : vector<8x32xf32>
      %28 = arith.addf %arg7, %27 : vector<8x32xf32>
      %29 = arith.mulf %21, %25 : vector<8x32xf32>
      %30 = arith.addf %28, %29 : vector<8x32xf32>
      %c1_i32_13 = arith.constant 1 : i32
      %cst_14 = arith.constant dense<0.000000e+00> : vector<8x64xf32>
      %31 = tpu.matmul %30, %0, %cst_14 {dimension_numbers = #tpu.dot_dimension_numbers<[1], [0], [0], [1], [0, 0, 1, 1], [], []>} : vector<8x32xf32>, vector<32x64xf32>, vector<8x64xf32> -> vector<8x64xf32>
      %32 = arith.addf %31, %3 : vector<8x64xf32>
      %33 = vector.extract_strided_slice %32 {offsets = [0, 0], sizes = [8, 32], strides = [1, 1]} : vector<8x64xf32> to vector<8x32xf32>
      %34 = math.tanh %33 : vector<8x32xf32>
      %35 = vector.extract_strided_slice %32 {offsets = [0, 32], sizes = [8, 32], strides = [1, 1]} : vector<8x64xf32> to vector<8x32xf32>
      %36 = arith.negf %35 : vector<8x32xf32>
      %37 = math.exp %36 : vector<8x32xf32>
      %cst_15 = arith.constant 1.000000e+00 : f32
      %38 = vector.broadcast %cst_15 : f32 to vector<8x32xf32>
      %39 = arith.addf %38, %37 : vector<8x32xf32>
      %40 = arith.divf %38, %39 : vector<8x32xf32>
      %41 = arith.index_cast %arg6 : i32 to index
      %42 = arith.index_cast %c1_i32_13 : i32 to index
      %c0_16 = arith.constant 0 : index
      %c0_17 = arith.constant 0 : index
      %43 = vector.load %arg4[%41, %42, %c0_16, %c0_17] : memref<8x2x8x32xf32, #tpu.memory_space<vmem>>, vector<1x1x8x32xf32>
      %44 = vector.shape_cast %43 : vector<1x1x8x32xf32> to vector<8x32xf32>
      %45 = vector.broadcast %11 : f32 to vector<8x32xf32>
      %46 = arith.mulf %34, %45 : vector<8x32xf32>
      %47 = arith.addf %30, %46 : vector<8x32xf32>
      %48 = arith.mulf %40, %44 : vector<8x32xf32>
      %49 = arith.addf %47, %48 : vector<8x32xf32>
      %c2_i32 = arith.constant 2 : i32
      %50 = arith.index_cast %arg6 : i32 to index
      %c0_18 = arith.constant 0 : index
      %c0_19 = arith.constant 0 : index
      %51 = vector.load %arg5[%50, %c0_18, %c0_19] : memref<8x8x32xf32, #tpu.memory_space<vmem>>, vector<1x8x32xf32>
      %52 = vector.shape_cast %51 : vector<1x8x32xf32> to vector<8x32xf32>
      %53 = vector.shape_cast %49 : vector<8x32xf32> to vector<1x8x32xf32>
      tpu.vector_store %arg5[%50, %c0_18, %c0_19], %53 {strides = array<i32>} : memref<8x8x32xf32, #tpu.memory_space<vmem>>, vector<1x8x32xf32>,
      scf.yield %49 : vector<8x32xf32>
    }
    %c7_i32_9 = arith.constant 7 : i32
    return
  }
}

</mosaic_0001>

<llo_original>
// kernel: tpu_custom_call.1
$region0: #{tpu_custom_call.1}
  #allocation0 [shape = 'u32[]', space=smem, size = 0x4, offset = 0x4, fixed_abs, tag = 'smem constant byte address 0x4 - core index']
  #allocation1 [shape = 'u32[144,128]{1,0:T(1,128)}', space=vmem, size = 0x12000, scoped, tag = 'internal scratch']
  %s0 = inlined_call_operand.hbm [shape: f32[8], index: 0, kind: input, shape index: {}]
  %s1 = inlined_call_operand.hbm [shape: f32[8,32], index: 1, kind: input, shape index: {}]
  %s2 = inlined_call_operand.hbm [shape: f32[32,64], index: 2, kind: input, shape index: {}]
  %s3 = inlined_call_operand.vmem [shape: f32[1,64], index: 3, kind: input, shape index: {}]
  %s4 = inlined_call_operand.hbm [shape: f32[8,2,8,32], index: 4, kind: input, shape index: {}]
  %s5 = inlined_call_operand.hbm [shape: f32[8,8,32], index: 5, kind: output, shape index: {}]
  %s6 = sld [smem:[#allocation0]]
  $region53: #{tpu_custom_call.1} parent=0
    _
  %s8 = ssub.s32 1, %s6
  %s9 = scalar_select 0, %s8, %s6
  $region1: #{tpu_custom_call.1} parent=0
    #allocation2 [shape = 'u8[512]{0}', space=smem, size = 0x200, scoped, tag = 'input window, operand 0, single buffered']
    #allocation3 [shape = 's32[1]{0}', space=sflag, size = 0x4, scoped, tag = 'scoped memory for tpu_custom_call.1']
    #allocation4 [shape = 's32[1]{0}', space=sflag, size = 0x4, scoped, tag = 'scoped memory for tpu_custom_call.1']
    #allocation5 [shape = 's32[1]{0}', space=sflag, size = 0x4, scoped, tag = 'scoped memory for tpu_custom_call.1']
    #allocation6 [shape = 'u8[4096]{0}', space=vmem, size = 0x1000, scoped, tag = 'input window, operand 1, single buffered']
    #allocation7 [shape = 'u8[16384]{0}', space=vmem, size = 0x4000, scoped, tag = 'input window, operand 2, single buffered']
    #allocation8 [shape = 's32[1]{0}', space=sflag, size = 0x4, scoped, tag = 'scoped memory for tpu_custom_call.1']
    #allocation9 [shape = 'u8[65536]{0}', space=vmem, size = 0x10000, scoped, tag = 'input window, operand 4, single buffered']
    #allocation10 [shape = 'u8[32768]{0}', space=vmem, size = 0x8000, scoped, tag = 'output window, operand 0, single buffered']
    %10 = vsyncpa [#allocation5], 0
    %11 = vsyncpa [#allocation3], 0
    %12 = vsyncpa [#allocation8], 0
    %13 = vsyncpa [#allocation4], 0
    // Predicated region
    $region2: #{tpu_custom_call.1} parent=1 // pred_check
      _
    $region3: #{tpu_custom_call.1} parent=1 // pred_check_branch
      %15 = sbr.rel (0) target = $region5
    $region4: #{tpu_custom_call.1} parent=1 // pred_region
      %s17 = ssub.s32 16, 16
      %18 = vsyncadd [#allocation5], %s17
      %21 = dma.hbm_to_smem %s0, 16, [#allocation2], [#allocation5]
    $region5: #{tpu_custom_call.1} parent=1 // pred_fallthru
      _
    // Predicated region
    $region6: #{tpu_custom_call.1} parent=1 // pred_check
      _
    $region7: #{tpu_custom_call.1} parent=1 // pred_check_branch
      %23 = sbr.rel (0) target = $region9
    $region8: #{tpu_custom_call.1} parent=1 // pred_region
      %s25 = ssub.s32 128, 128
      %26 = vsyncadd [#allocation3], %s25
      %s28 = sshll.u32 [#allocation6], 4
      %s29 = int_to_ptr.vmem [resolvable:$true] %s28
      %31 = dma.hbm_to_vmem [thread:$0]  %s1, 128, %s29, [#allocation3]
    $region9: #{tpu_custom_call.1} parent=1 // pred_fallthru
      _
    // Predicated region
    $region10: #{tpu_custom_call.1} parent=1 // pred_check
      _
    $region11: #{tpu_custom_call.1} parent=1 // pred_check_branch
      %33 = sbr.rel (0) target = $region13
    $region12: #{tpu_custom_call.1} parent=1 // pred_region
      %s35 = ssub.s32 512, 512
      %36 = vsyncadd [#allocation8], %s35
      %s37 = sshll.u32 [#allocation7], 4
      %s38 = int_to_ptr.vmem [resolvable:$true] %s37
      %43 = dma.hbm_to_vmem [thread:$0]  %s2, 512, %s38, [#allocation8], 128, 128, 8
    $region13: #{tpu_custom_call.1} parent=1 // pred_fallthru
      _
    // Predicated region
    $region14: #{tpu_custom_call.1} parent=1 // pred_check
      _
    $region15: #{tpu_custom_call.1} parent=1 // pred_check_branch
      %45 = sbr.rel (0) target = $region17
    $region16: #{tpu_custom_call.1} parent=1 // pred_region
      _
    $region17: #{tpu_custom_call.1} parent=1 // pred_fallthru
      _
    // Predicated region
    $region18: #{tpu_custom_call.1} parent=1 // pred_check
      _
    $region19: #{tpu_custom_call.1} parent=1 // pred_check_branch
      %47 = sbr.rel (0) target = $region21
    $region20: #{tpu_custom_call.1} parent=1 // pred_region
      %s49 = ssub.s32 2048, 2048
      %50 = vsyncadd [#allocation8], %s49
      %s51 = sshll.u32 [#allocation9], 4
      %s52 = int_to_ptr.vmem [resolvable:$true] %s51
      %57 = dma.hbm_to_vmem [thread:$0]  %s4, 2048, %s52, [#allocation8], 128, 128, 8
    $region21: #{tpu_custom_call.1} parent=1 // pred_fallthru
      _
    // Predicated region
    $region22: #{tpu_custom_call.1} parent=1 // pred_check
      _
    $region23: #{tpu_custom_call.1} parent=1 // pred_check_branch
      %59 = sbr.rel (0) target = $region25
    $region24: #{tpu_custom_call.1} parent=1 // pred_region
      %60 = dma.done [#allocation5], 16
    $region25: #{tpu_custom_call.1} parent=1 // pred_fallthru
      _
    // Predicated region
    $region26: #{tpu_custom_call.1} parent=1 // pred_check
      _
    $region27: #{tpu_custom_call.1} parent=1 // pred_check_branch
      %62 = sbr.rel (0) target = $region29
    $region28: #{tpu_custom_call.1} parent=1 // pred_region
      %63 = dma.done [#allocation3], 128
    $region29: #{tpu_custom_call.1} parent=1 // pred_fallthru
      _
    // Predicated region
    $region30: #{tpu_custom_call.1} parent=1 // pred_check
      _
    $region31: #{tpu_custom_call.1} parent=1 // pred_check_branch
      %65 = sbr.rel (0) target = $region33
    $region32: #{tpu_custom_call.1} parent=1 // pred_region
      %66 = dma.done [#allocation8], 512
    $region33: #{tpu_custom_call.1} parent=1 // pred_fallthru
      _
    // Predicated region
    $region34: #{tpu_custom_call.1} parent=1 // pred_check
      _
    $region35: #{tpu_custom_call.1} parent=1 // pred_check_branch
      %68 = sbr.rel (0) target = $region37
    $region36: #{tpu_custom_call.1} parent=1 // pred_region
      %69 = dma.done [#allocation8], 2048
    $region37: #{tpu_custom_call.1} parent=1 // pred_fallthru
      _
    %70 = sfence
    %v71 = vld [vmem:[#allocation7] sm:$0xff]
    %v72 = vld [vmem:[#allocation7 + $0x8] sm:$0xff]
    %v73 = vld [vmem:[#allocation7 + $0x10] sm:$0xff]
    %v74 = vld [vmem:[#allocation7 + $0x18] sm:$0xff]
    %v75 = vld [vmem:[%s3] sm:$0x1]
    %v77 = vlaneseq
    %v78 = vshrl.u32 %v77, 7
    %v79 = vsub.s32 0, %v78
    %v80 = vrot.slane %v75, %v79
    %v82 = vld [vmem:[#allocation6] sm:$0xff]
    %vm83 = vcmask 261120
    %84 = vst.msk [vmem:[#allocation10] sm:$0xff] %vm83, %v82
    loop: start=1, step=1, limit=8
    $region38: #{tpu_custom_call.1} parent=1 // loop_pre_header
      _
    $region39: #{tpu_custom_call.1} parent=1 // loop_header
      %s86 = sphi 1, %s90
      %p87 = scmp.ge.s32.totalorder %s86, 8
      %v91 = vphi %v82, %v283
    $region40: #{tpu_custom_call.1} parent=1 // loop_header_branch
      %89 = sbr.rel (%p87) target = $region44
    $region41: #{tpu_custom_call.1} parent=1 // loop_body
      %s92 = sld [smem:[#allocation2 + %s86]]
      %v94 = vsel %vm83, %v91, 0
      %96 = vmatprep.subr.mxu0 0.0
      %97 = vmatpush1.msra.mxu0 %v71
      %98 = vmatprep.subr.mxu0 0.0
      %99 = vmatpush1.msra.mxu0 %v72
      %100 = vmatprep.subr.mxu0 0.0
      %101 = vmatpush1.msra.mxu0 %v73
      %102 = vmatprep.subr.mxu0 0.0
      %103 = vmatpush1.msra.mxu0 %v74
      %104 = vmatprep.subr.mxu0 0.0
      %105 = vmatpush1.msra.mxu0 0.0
      %106 = vmatprep.subr.mxu0 0.0
      %107 = vmatpush1.msra.mxu0 0.0
      %108 = vmatprep.subr.mxu0 0.0
      %109 = vmatpush1.msra.mxu0 0.0
      %110 = vmatprep.subr.mxu0 0.0
      %111 = vmatpush1.msra.mxu0 0.0
      %112 = vmatprep.subr.mxu0 0.0
      %113 = vmatpush1.msra.mxu0 0.0
      %114 = vmatprep.subr.mxu0 0.0
      %115 = vmatpush1.msra.mxu0 0.0
      %116 = vmatprep.subr.mxu0 0.0
      %117 = vmatpush1.msra.mxu0 0.0
      %118 = vmatprep.subr.mxu0 0.0
      %119 = vmatpush1.msra.mxu0 0.0
      %120 = vmatprep.subr.mxu0 0.0
      %121 = vmatpush1.msra.mxu0 0.0
      %122 = vmatprep.subr.mxu0 0.0
      %123 = vmatpush1.msra.mxu0 0.0
      %124 = vmatprep.subr.mxu0 0.0
      %125 = vmatpush1.msra.mxu0 0.0
      %126 = vmatprep.subr.mxu0 0.0
      %127 = vmatpush1.msra.mxu0 0.0
      %128 = vmatprep.subr.mxu0 0.0
      %129 = vmatpush1.msra.mxu0 0.0
      %130 = vmatprep.subr.mxu0 0.0
      %131 = vmatpush1.msra.mxu0 0.0
      %132 = vmatprep.subr.mxu0 0.0
      %133 = vmatpush1.msra.mxu0 0.0
      %134 = vmatprep.subr.mxu0 0.0
      %135 = vmatpush1.msra.mxu0 0.0
      %136 = vmatprep.subr.mxu0 0.0
      %137 = vmatpush1.msra.mxu0 0.0
      %138 = vmatprep.subr.mxu0 0.0
      %139 = vmatpush1.msra.mxu0 0.0
      %140 = vmatprep.subr.mxu0 0.0
      %141 = vmatpush1.msra.mxu0 0.0
      %142 = vmatprep.subr.mxu0 0.0
      %143 = vmatpush1.msra.mxu0 0.0
      %144 = vmatprep.subr.mxu0 0.0
      %145 = vmatpush1.msra.mxu0 0.0
      %146 = vmatprep.subr.mxu0 0.0
      %147 = vmatpush1.msra.mxu0 0.0
      %148 = vmatprep.subr.mxu0 0.0
      %149 = vmatpush1.msra.mxu0 0.0
      %150 = vmatprep.subr.mxu0 0.0
      %151 = vmatpush1.msra.mxu0 0.0
      %152 = vmatprep.subr.mxu0 0.0
      %153 = vmatpush1.msra.mxu0 0.0
      %154 = vmatprep.subr.mxu0 0.0
      %155 = vmatpush1.msra.mxu0 0.0
      %156 = vmatprep.subr.mxu0 0.0
      %157 = vmatpush1.msra.mxu0 0.0
      %158 = vmatprep.subr.mxu0 0.0
      %159 = vmatpush1.msra.mxu0 0.0
      %160 = vmatprep.mubr.f32.mxu0 0.0
      %161 = vmatmul.mubr.f32.gmra.mrb[0].mxu0 %v94
      %v162 = vpop.f32.mrb[0].mxu0
      %v163 = vadd.f32 %v80, %v162
      %v164 = vpop.f32.mrb[0].mxu0
      %165 = vdwg.mxu0
      %v166 = vtanh.pop %v163
      %v167 = vxor.u32 %v163, 2147483648
      %v168 = vmul.f32 %v167, 1.442695
      %v169 = vpow.pop %v168
      %v170 = vadd.f32 %v169, 1.0
      %v171 = vrcp.pop %v170
      %v172 = vmul.f32 1.0, %v171
      %s173 = smul.u32 %s86, 16
      %s174 = scalar_lea.vmem [#allocation9], %s173
      %v175 = vld [vmem:[%s174] sm:$0xff]
      %v176 = vstv %s92
      %v177 = vmul.f32 %v166, %v176
      %v178 = vadd.f32 %v91, %v177
      %180 = vrot.lane.b32.xlu0 %v175, 32
      %v181 = vpop.permute.xlu0 %180
      %v183 = vmul.f32 %v172, %v181
      %185 = vrot.lane.b32.xlu0 %v183, 96
      %v186 = vpop.permute.xlu0 %185
      %v188 = vadd.f32 %v178, %v186
      %v190 = vsel %vm83, %v188, 0
      %192 = vmatprep.subr.mxu0 0.0
      %193 = vmatpush1.msra.mxu0 %v71
      %194 = vmatprep.subr.mxu0 0.0
      %195 = vmatpush1.msra.mxu0 %v72
      %196 = vmatprep.subr.mxu0 0.0
      %197 = vmatpush1.msra.mxu0 %v73
      %198 = vmatprep.subr.mxu0 0.0
      %199 = vmatpush1.msra.mxu0 %v74
      %200 = vmatprep.subr.mxu0 0.0
      %201 = vmatpush1.msra.mxu0 0.0
      %202 = vmatprep.subr.mxu0 0.0
      %203 = vmatpush1.msra.mxu0 0.0
      %204 = vmatprep.subr.mxu0 0.0
      %205 = vmatpush1.msra.mxu0 0.0
      %206 = vmatprep.subr.mxu0 0.0
      %207 = vmatpush1.msra.mxu0 0.0
      %208 = vmatprep.subr.mxu0 0.0
      %209 = vmatpush1.msra.mxu0 0.0
      %210 = vmatprep.subr.mxu0 0.0
      %211 = vmatpush1.msra.mxu0 0.0
      %212 = vmatprep.subr.mxu0 0.0
      %213 = vmatpush1.msra.mxu0 0.0
      %214 = vmatprep.subr.mxu0 0.0
      %215 = vmatpush1.msra.mxu0 0.0
      %216 = vmatprep.subr.mxu0 0.0
      %217 = vmatpush1.msra.mxu0 0.0
      %218 = vmatprep.subr.mxu0 0.0
      %219 = vmatpush1.msra.mxu0 0.0
      %220 = vmatprep.subr.mxu0 0.0
      %221 = vmatpush1.msra.mxu0 0.0
      %222 = vmatprep.subr.mxu0 0.0
      %223 = vmatpush1.msra.mxu0 0.0
      %224 = vmatprep.subr.mxu0 0.0
      %225 = vmatpush1.msra.mxu0 0.0
      %226 = vmatprep.subr.mxu0 0.0
      %227 = vmatpush1.msra.mxu0 0.0
      %228 = vmatprep.subr.mxu0 0.0
      %229 = vmatpush1.msra.mxu0 0.0
      %230 = vmatprep.subr.mxu0 0.0
      %231 = vmatpush1.msra.mxu0 0.0
      %232 = vmatprep.subr.mxu0 0.0
      %233 = vmatpush1.msra.mxu0 0.0
      %234 = vmatprep.subr.mxu0 0.0
      %235 = vmatpush1.msra.mxu0 0.0
      %236 = vmatprep.subr.mxu0 0.0
      %237 = vmatpush1.msra.mxu0 0.0
      %238 = vmatprep.subr.mxu0 0.0
      %239 = vmatpush1.msra.mxu0 0.0
      %240 = vmatprep.subr.mxu0 0.0
      %241 = vmatpush1.msra.mxu0 0.0
      %242 = vmatprep.subr.mxu0 0.0
      %243 = vmatpush1.msra.mxu0 0.0
      %244 = vmatprep.subr.mxu0 0.0
      %245 = vmatpush1.msra.mxu0 0.0
      %246 = vmatprep.subr.mxu0 0.0
      %247 = vmatpush1.msra.mxu0 0.0
      %248 = vmatprep.subr.mxu0 0.0
      %249 = vmatpush1.msra.mxu0 0.0
      %250 = vmatprep.subr.mxu0 0.0
      %251 = vmatpush1.msra.mxu0 0.0
      %252 = vmatprep.subr.mxu0 0.0
      %253 = vmatpush1.msra.mxu0 0.0
      %254 = vmatprep.subr.mxu0 0.0
      %255 = vmatpush1.msra.mxu0 0.0
      %256 = vmatprep.mubr.f32.mxu0 0.0
      %257 = vmatmul.mubr.f32.gmra.mrb[0].mxu0 %v190
      %v258 = vpop.f32.mrb[0].mxu0
      %v259 = vadd.f32 %v80, %v258
      %v260 = vpop.f32.mrb[0].mxu0
      %261 = vdwg.mxu0
      %v262 = vtanh.pop %v259
      %v263 = vxor.u32 %v259, 2147483648
      %v264 = vmul.f32 %v263, 1.442695
      %v265 = vpow.pop %v264
      %v266 = vadd.f32 %v265, 1.0
      %v267 = vrcp.pop %v266
      %v268 = vmul.f32 1.0, %v267
      %s269 = sadd.s32 8, %s173
      %s270 = scalar_lea.vmem [#allocation9], %s269
      %v271 = vld [vmem:[%s270] sm:$0xff]
      %v272 = vmul.f32 %v262, %v176
      %v273 = vadd.f32 %v188, %v272
      %275 = vrot.lane.b32.xlu0 %v271, 32
      %v276 = vpop.permute.xlu0 %275
      %v278 = vmul.f32 %v268, %v276
      %280 = vrot.lane.b32.xlu0 %v278, 96
      %v281 = vpop.permute.xlu0 %280
      %v283 = vadd.f32 %v273, %v281
      %s284 = smul.u32 %s86, 8
      %s285 = scalar_lea.vmem [#allocation10], %s284
      %286 = vst.msk [vmem:[%s285] sm:$0xff] %vm83, %v283
    $region42: #{tpu_custom_call.1} parent=1 // loop_footer
      %s90 = sadd.s32 1, %s86
    $region43: #{tpu_custom_call.1} parent=1 // loop_footer_branch
      %85 = sbr.rel target = $region39
    $region44: #{tpu_custom_call.1} parent=1 // loop_exit
      _
    // Predicated region
    $region45: #{tpu_custom_call.1} parent=1 // pred_check
      _
    $region46: #{tpu_custom_call.1} parent=1 // pred_check_branch
      %288 = sbr.rel (0) target = $region48
    $region47: #{tpu_custom_call.1} parent=1 // pred_region
      %s290 = ssub.s32 1024, 1024
      %291 = vsyncadd [#allocation4], %s290
      %s292 = sshll.u32 [#allocation10], 4
      %s293 = int_to_ptr.vmem [resolvable:$true] %s292
      %298 = dma.vmem_to_hbm [thread:$0]  %s293, 1024, %s5, [#allocation4], 128, 128, 8
    $region48: #{tpu_custom_call.1} parent=1 // pred_fallthru
      _
    // Predicated region
    $region49: #{tpu_custom_call.1} parent=1 // pred_check
      _
    $region50: #{tpu_custom_call.1} parent=1 // pred_check_branch
      %300 = sbr.rel (0) target = $region52
    $region51: #{tpu_custom_call.1} parent=1 // pred_region
      %301 = dma.done [#allocation4], 1024
    $region52: #{tpu_custom_call.1} parent=1 // pred_fallthru
      _
    %302 = vsyncpa [#allocation3], 1
    %303 = vsyncpa [#allocation8], 1
    %304 = vsyncpa [#allocation4], 1
    %305 = vsyncpa [#allocation5], 1

</llo_original>
